<compile_context>
chip_gen: v5e
topology: v5e:2x2
jax: 0.10.0
libtpu: 0.0.40
codegen_flags: <defaults>
</compile_context>

<pallas_src>
import functools

import jax
import jax.numpy as jnp
import numpy as np
from jax import lax
from jax.experimental import pallas as pl
from jax.experimental.pallas import tpu as pltpu


def _round_up(x, m):
    return ((x + m - 1) // m) * m


_UNROLL_THRESHOLD = 32  # fully unroll the per-chunk neuron loop up to this size


def _min_max_kernel(w1_ref, w2_ref, w3_ref, b_ref, x_ref, o_ref, *, num_neuron):
    # w1/w2/w3/b: (N,) f32 in SMEM (w2 already exp'ed, b = b1 + b2 + b3).
    # x_ref:      (3, R, L) f32 in VMEM -- batch dense over sublanes x lanes.
    # o_ref:      (R, L)    f32 in VMEM -- lane/sublane-dense output slab.
    split = num_neuron // 3

    xa = x_ref[0]                  # (R, L) dense slabs -> full vreg occupancy
    xb = x_ref[1]
    xc = x_ref[2]

    def neuron(n):
        # scalar-broadcast FMA chain on the VPU; n may be static or traced.
        return xa * w1_ref[n] + xb * w2_ref[n] + xc * w3_ref[n] + b_ref[n]

    result = None
    for c in range(3):
        base = c * split
        if split <= _UNROLL_THRESHOLD:
            chunk_max = neuron(base)
            for j in range(1, split):
                chunk_max = jnp.maximum(chunk_max, neuron(base + j))
        else:
            # Large N: bound code size / scalar-slot pressure with a rolled
            # loop (modest unroll keeps the LLO scheduler fed).
            def body(j, carry):
                return jnp.maximum(carry, neuron(base + j))

            chunk_max = lax.fori_loop(1, split, body, neuron(base), unroll=8)
        result = chunk_max if result is None else jnp.minimum(result, chunk_max)

    o_ref[...] = result.astype(o_ref.dtype)


def min_max_forward(x, w1, b1, w2_raw, b2, w3, b3, *,
                    max_lane=512, block_elems=256 * 1024):
    """x: (B, 3) float32.  w*: (N, 1), b*: (N,) -- as in nn.Linear(1, N)."""
    B, F = x.shape
    assert F == 3
    N = w1.shape[0]
    assert N % 3 == 0 and N >= 3

    # --- loop-invariant parameter folding (done once, O(N)) -----------------
    w1_v = w1.reshape(N).astype(jnp.float32)
    w2_v = jnp.exp(w2_raw.reshape(N).astype(jnp.float32))   # ExponentialParameterization
    w3_v = w3.reshape(N).astype(jnp.float32)
    b_v = (b1 + b2 + b3).reshape(N).astype(jnp.float32)

    # --- batch re-layout: dense over (rows, L) = (sublanes, lanes) ----------
    # NOTE: the transpose+pad below is one extra HBM pass over x; if the
    # producer can emit x feature-major / pre-padded, fold it away upstream.
    L = min(_round_up(max_lane, 128), _round_up(B, 128))     # lanes, mult of 128
    rows = pl.cdiv(B, L)
    rows_pad = _round_up(rows, 8)                            # sublane granularity only
    total = rows_pad * L
    x_t = jnp.pad(x.astype(jnp.float32).T, ((0, 0), (0, total - B)))
    x_t = x_t.reshape(3, rows_pad, L)

    # --- block size: ~block_elems f32 per output slab, R multiple of 8 ------
    blk = min(max(block_elems, 8 * 128), 512 * 1024)   # cap: 2x-buffered <= ~16 MiB
    R = max(8, min(_round_up(max(blk // L, 1), 8), rows_pad))
    # Keep >= 2 grid steps when possible so the "parallel" axis can be sharded
    # across both TensorCores on megacore parts (v7x).
    if rows_pad > 8 and pl.cdiv(rows_pad, R) < 2:
        R = max(8, _round_up(pl.cdiv(rows_pad, 2), 8))

    grid = (pl.cdiv(rows_pad, R),)
    smem = pl.BlockSpec(memory_space=pltpu.MemorySpace.SMEM)

    out = pl.pallas_call(
        functools.partial(_min_max_kernel, num_neuron=N),
        out_shape=jax.ShapeDtypeStruct((rows_pad, L), jnp.float32),
        grid=grid,
        in_specs=[smem, smem, smem, smem,                         # w1, exp(w2), w3, b_sum
                  pl.BlockSpec((3, R, L), lambda i: (0, i, 0))],  # x slab
        out_specs=pl.BlockSpec((R, L), lambda i: (i, 0)),
        compiler_params=pltpu.CompilerParams(
            dimension_semantics=("parallel",),
            vmem_limit_bytes=32 * 1024 * 1024),
    )(w1_v, w2_v, w3_v, b_v, x_t)

    # Padded positions never interact with real ones (purely elementwise per
    # (row, lane) position), so just slice them off.
    return out.reshape(-1)[:B].reshape(B, 1)


def _reference(x, w1, b1, w2_raw, b2, w3, b3):
    # Pure-JAX reference mirroring the PyTorch forward.
    xa, xb, xc = x[:, :1], x[:, 1:2], x[:, 2:]
    h = (xa @ w1.T + b1) + (xb @ jnp.exp(w2_raw).T + b2) + (xc @ w3.T + b3)
    N = w1.shape[0]
    split = N // 3
    chunks = [jnp.max(h[:, i * split:(i + 1) * split], axis=-1, keepdims=True)
              for i in range(3)]
    cat = jnp.concatenate(chunks, axis=-1)
    return jnp.min(cat, axis=-1).reshape(-1, 1)


def _make_params(key, num_neuron):
    k1, k2, k3, k4, k5, k6 = jax.random.split(key, 6)
    w1 = jax.random.uniform(k1, (num_neuron, 1), jnp.float32, -1.0, 1.0)
    b1 = jax.random.uniform(k2, (num_neuron,), jnp.float32, -1.0, 1.0)
    w2 = jax.random.uniform(k3, (num_neuron, 1), jnp.float32, -1.0, 1.0)
    b2 = jax.random.uniform(k4, (num_neuron,), jnp.float32, -1.0, 1.0)
    w3 = jax.random.uniform(k5, (num_neuron, 1), jnp.float32, -1.0, 1.0)
    b3 = jax.random.uniform(k6, (num_neuron,), jnp.float32, -1.0, 1.0)
    return w1, b1, w2, b2, w3, b3


if __name__ == "__main__":
    key = jax.random.PRNGKey(0)
    kp, kx, kp2, kx2, kp3, kx3 = jax.random.split(key, 6)

    # --- test 1: module default shapes (num_neuron=3, small batch) ----------
    num_neuron = 3
    B = 8
    params = _make_params(kp, num_neuron)
    x = jax.random.normal(kx, (B, 3), jnp.float32)

    out = jax.block_until_ready(min_max_forward(x, *params))
    ref = jax.block_until_ready(_reference(x, *params))
    assert out.shape == (B, 1)
    assert np.allclose(np.asarray(out), np.asarray(ref), rtol=1e-5, atol=1e-5)

    # --- test 2: non-aligned batch, wider N, default tiling ------------------
    num_neuron2 = 6
    B2 = 300
    params2 = _make_params(kp2, num_neuron2)
    x2 = jax.random.normal(kx2, (B2, 3), jnp.float32)

    out2 = jax.block_until_ready(min_max_forward(x2, *params2))
    ref2 = jax.block_until_ready(_reference(x2, *params2))
    assert out2.shape == (B2, 1)
    assert np.allclose(np.asarray(out2), np.asarray(ref2), rtol=1e-5, atol=1e-5)

    # --- test 3: multi-step grid (small blocks), large N -> fori_loop path ---
    num_neuron3 = 120
    B3 = 5000
    params3 = _make_params(kp3, num_neuron3)
    x3 = jax.random.normal(kx3, (B3, 3), jnp.float32)

    out3 = jax.block_until_ready(
        min_max_forward(x3, *params3, max_lane=256, block_elems=2048))
    ref3 = jax.block_until_ready(_reference(x3, *params3))
    assert out3.shape == (B3, 1)
    assert np.allclose(np.asarray(out3), np.asarray(ref3), rtol=1e-5, atol=1e-5)

    print("KERNEL_OK")
</pallas_src>

<mosaic_0001>
module attributes {stable_mosaic.version = 11 : i64} {
  func.func @_min_max_kernel(%arg0: i32, %arg1: memref<3xf32, #tpu.memory_space<smem>>, %arg2: memref<3xf32, #tpu.memory_space<smem>>, %arg3: memref<3xf32, #tpu.memory_space<smem>>, %arg4: memref<3xf32, #tpu.memory_space<smem>>, %arg5: memref<3x8x128xf32, #tpu.memory_space<vmem>>, %arg6: memref<8x128xf32, #tpu.memory_space<vmem>>) attributes {dimension_semantics = [#tpu.dimension_semantics<parallel>], iteration_bounds = array<i64: 1>, scalar_prefetch = 0 : i64, scratch_operands = 0 : i64, tpu.core_type = #tpu.core_type<tc>, window_params = [{transform_indices = @transform_0, window_bounds = array<i64: 3>}, {transform_indices = @transform_1, window_bounds = array<i64: 3>}, {transform_indices = @transform_2, window_bounds = array<i64: 3>}, {transform_indices = @transform_3, window_bounds = array<i64: 3>}, {transform_indices = @transform_4, window_bounds = array<i64: 3, 8, 128>}, {transform_indices = @transform_5, window_bounds = array<i64: 8, 128>}]} {
    %c0 = arith.constant 0 : index
    %c0_0 = arith.constant 0 : index
    %c0_1 = arith.constant 0 : index
    %0 = vector.load %arg5[%c0, %c0_0, %c0_1] : memref<3x8x128xf32, #tpu.memory_space<vmem>>, vector<1x8x128xf32>
    %1 = vector.shape_cast %0 : vector<1x8x128xf32> to vector<8x128xf32>
    %c1 = arith.constant 1 : index
    %c0_2 = arith.constant 0 : index
    %c0_3 = arith.constant 0 : index
    %2 = vector.load %arg5[%c1, %c0_2, %c0_3] : memref<3x8x128xf32, #tpu.memory_space<vmem>>, vector<1x8x128xf32>
    %3 = vector.shape_cast %2 : vector<1x8x128xf32> to vector<8x128xf32>
    %c2 = arith.constant 2 : index
    %c0_4 = arith.constant 0 : index
    %c0_5 = arith.constant 0 : index
    %4 = vector.load %arg5[%c2, %c0_4, %c0_5] : memref<3x8x128xf32, #tpu.memory_space<vmem>>, vector<1x8x128xf32>
    %5 = vector.shape_cast %4 : vector<1x8x128xf32> to vector<8x128xf32>
    %c0_6 = arith.constant 0 : index
    %6 = memref.load %arg1[%c0_6] : memref<3xf32, #tpu.memory_space<smem>>
    %7 = vector.broadcast %6 : f32 to vector<8x128xf32>
    %8 = arith.mulf %1, %7 : vector<8x128xf32>
    %c0_7 = arith.constant 0 : index
    %9 = memref.load %arg2[%c0_7] : memref<3xf32, #tpu.memory_space<smem>>
    %10 = vector.broadcast %9 : f32 to vector<8x128xf32>
    %11 = arith.mulf %3, %10 : vector<8x128xf32>
    %12 = arith.addf %8, %11 : vector<8x128xf32>
    %c0_8 = arith.constant 0 : index
    %13 = memref.load %arg3[%c0_8] : memref<3xf32, #tpu.memory_space<smem>>
    %14 = vector.broadcast %13 : f32 to vector<8x128xf32>
    %15 = arith.mulf %5, %14 : vector<8x128xf32>
    %16 = arith.addf %12, %15 : vector<8x128xf32>
    %c0_9 = arith.constant 0 : index
    %17 = memref.load %arg4[%c0_9] : memref<3xf32, #tpu.memory_space<smem>>
    %18 = vector.broadcast %17 : f32 to vector<8x128xf32>
    %19 = arith.addf %16, %18 : vector<8x128xf32>
    %c1_10 = arith.constant 1 : index
    %20 = memref.load %arg1[%c1_10] : memref<3xf32, #tpu.memory_space<smem>>
    %21 = vector.broadcast %20 : f32 to vector<8x128xf32>
    %22 = arith.mulf %1, %21 : vector<8x128xf32>
    %c1_11 = arith.constant 1 : index
    %23 = memref.load %arg2[%c1_11] : memref<3xf32, #tpu.memory_space<smem>>
    %24 = vector.broadcast %23 : f32 to vector<8x128xf32>
    %25 = arith.mulf %3, %24 : vector<8x128xf32>
    %26 = arith.addf %22, %25 : vector<8x128xf32>
    %c1_12 = arith.constant 1 : index
    %27 = memref.load %arg3[%c1_12] : memref<3xf32, #tpu.memory_space<smem>>
    %28 = vector.broadcast %27 : f32 to vector<8x128xf32>
    %29 = arith.mulf %5, %28 : vector<8x128xf32>
    %30 = arith.addf %26, %29 : vector<8x128xf32>
    %c1_13 = arith.constant 1 : index
    %31 = memref.load %arg4[%c1_13] : memref<3xf32, #tpu.memory_space<smem>>
    %32 = vector.broadcast %31 : f32 to vector<8x128xf32>
    %33 = arith.addf %30, %32 : vector<8x128xf32>
    %34 = arith.minimumf %19, %33 : vector<8x128xf32>
    %c2_14 = arith.constant 2 : index
    %35 = memref.load %arg1[%c2_14] : memref<3xf32, #tpu.memory_space<smem>>
    %36 = vector.broadcast %35 : f32 to vector<8x128xf32>
    %37 = arith.mulf %1, %36 : vector<8x128xf32>
    %c2_15 = arith.constant 2 : index
    %38 = memref.load %arg2[%c2_15] : memref<3xf32, #tpu.memory_space<smem>>
    %39 = vector.broadcast %38 : f32 to vector<8x128xf32>
    %40 = arith.mulf %3, %39 : vector<8x128xf32>
    %41 = arith.addf %37, %40 : vector<8x128xf32>
    %c2_16 = arith.constant 2 : index
    %42 = memref.load %arg3[%c2_16] : memref<3xf32, #tpu.memory_space<smem>>
    %43 = vector.broadcast %42 : f32 to vector<8x128xf32>
    %44 = arith.mulf %5, %43 : vector<8x128xf32>
    %45 = arith.addf %41, %44 : vector<8x128xf32>
    %c2_17 = arith.constant 2 : index
    %46 = memref.load %arg4[%c2_17] : memref<3xf32, #tpu.memory_space<smem>>
    %47 = vector.broadcast %46 : f32 to vector<8x128xf32>
    %48 = arith.addf %45, %47 : vector<8x128xf32>
    %49 = arith.minimumf %34, %48 : vector<8x128xf32>
    %c0_18 = arith.constant 0 : index
    %c0_19 = arith.constant 0 : index
    %50 = vector.load %arg6[%c0_18, %c0_19] : memref<8x128xf32, #tpu.memory_space<vmem>>, vector<8x128xf32>
    tpu.vector_store %arg6[%c0_18, %c0_19], %49 {strides = array<i32>} : memref<8x128xf32, #tpu.memory_space<vmem>>, vector<8x128xf32>,
    return
  }
  func.func @transform_0(%arg0: i32) -> i32 {
    %c0_i32 = arith.constant 0 : i32
    %c0_i32_0 = arith.constant 0 : i32
    return %c0_i32 : i32
  }
  func.func @transform_1(%arg0: i32) -> i32 {
    %c0_i32 = arith.constant 0 : i32
    %c0_i32_0 = arith.constant 0 : i32
    return %c0_i32 : i32
  }
  func.func @transform_2(%arg0: i32) -> i32 {
    %c0_i32 = arith.constant 0 : i32
    %c0_i32_0 = arith.constant 0 : i32
    return %c0_i32 : i32
  }
  func.func @transform_3(%arg0: i32) -> i32 {
    %c0_i32 = arith.constant 0 : i32
    %c0_i32_0 = arith.constant 0 : i32
    return %c0_i32 : i32
  }
  func.func @transform_4(%arg0: i32) -> (i32, i32, i32) {
    %c0_i32 = arith.constant 0 : i32
    %c0_i32_0 = arith.constant 0 : i32
    %c0_i32_1 = arith.constant 0 : i32
    return %c0_i32, %arg0, %c0_i32_0 : i32, i32, i32
  }
  func.func @transform_5(%arg0: i32) -> (i32, i32) {
    %c0_i32 = arith.constant 0 : i32
    %c0_i32_0 = arith.constant 0 : i32
    return %arg0, %c0_i32 : i32, i32
  }
}

</mosaic_0001>

<llo_original>
// kernel: tpu_custom_call.1
$region0: #{tpu_custom_call.1}
  #allocation0 [shape = 'u32[]', space=smem, size = 0x4, offset = 0x4, fixed_abs, tag = 'smem constant byte address 0x4 - core index']
  #allocation1 [shape = 'u32[72,128]{1,0:T(1,128)}', space=vmem, size = 0x9000, scoped, tag = 'internal scratch']
  %s0 = inlined_call_operand.hbm [shape: f32[3], index: 0, kind: input, shape index: {}]
  %s1 = inlined_call_operand.hbm [shape: f32[3], index: 1, kind: input, shape index: {}]
  %s2 = inlined_call_operand.vmem [shape: f32[3], index: 2, kind: input, shape index: {}]
  %s3 = inlined_call_operand.vmem [shape: f32[3], index: 3, kind: input, shape index: {}]
  %s4 = inlined_call_operand.hbm [shape: f32[3,8,128], index: 4, kind: input, shape index: {}]
  %s5 = inlined_call_operand.hbm [shape: f32[8,128], index: 5, kind: output, shape index: {}]
  %s6 = sld [smem:[#allocation0]]
  $region50: #{tpu_custom_call.1} parent=0
    _
  %s8 = ssub.s32 1, %s6
  %s9 = scalar_select 0, %s8, %s6
  $region1: #{tpu_custom_call.1} parent=0
    #allocation2 [shape = 'u8[512]{0}', space=smem, size = 0x200, scoped, tag = 'input window, operand 0, single buffered']
    #allocation3 [shape = 's32[1]{0}', space=sflag, size = 0x4, scoped, tag = 'scoped memory for tpu_custom_call.1']
    #allocation4 [shape = 's32[1]{0}', space=sflag, size = 0x4, scoped, tag = 'scoped memory for tpu_custom_call.1']
    #allocation5 [shape = 's32[1]{0}', space=sflag, size = 0x4, scoped, tag = 'scoped memory for tpu_custom_call.1']
    #allocation6 [shape = 's32[1]{0}', space=sflag, size = 0x4, scoped, tag = 'scoped memory for tpu_custom_call.1']
    #allocation7 [shape = 'u8[512]{0}', space=smem, size = 0x200, scoped, tag = 'input window, operand 1, single buffered']
    #allocation8 [shape = 's32[1]{0}', space=sflag, size = 0x4, scoped, tag = 'scoped memory for tpu_custom_call.1']
    #allocation9 [shape = 'u8[512]{0}', space=smem, size = 0x200, scoped, tag = 'input window, operand 2, single buffered']
    #allocation10 [shape = 'u8[512]{0}', space=smem, size = 0x200, scoped, tag = 'input window, operand 3, single buffered']
    #allocation11 [shape = 's32[1]{0}', space=sflag, size = 0x4, scoped, tag = 'scoped memory for tpu_custom_call.1']
    #allocation12 [shape = 'u8[12288]{0}', space=vmem, size = 0x3000, scoped, tag = 'input window, operand 4, single buffered']
    #allocation13 [shape = 'u8[4096]{0}', space=vmem, size = 0x1000, scoped, tag = 'output window, operand 0, single buffered']
    %10 = vsyncpa [#allocation5], 0
    %11 = vsyncpa [#allocation8], 0
    %12 = vsyncpa [#allocation6], 0
    %13 = vsyncpa [#allocation11], 0
    %14 = vsyncpa [#allocation3], 0
    %15 = vsyncpa [#allocation4], 0
    // Predicated region
    $region2: #{tpu_custom_call.1} parent=1 // pred_check
      _
    $region3: #{tpu_custom_call.1} parent=1 // pred_check_branch
      %17 = sbr.rel (0) target = $region5
    $region4: #{tpu_custom_call.1} parent=1 // pred_region
      %19 = vsyncadd [#allocation5], 0
      %s21 = sshll.u32 %s0, 4
      %s22 = int_to_ptr.hbm [resolvable:$true] %s21
      %24 = dma.hbm_to_smem %s22, 16, [#allocation2], [#allocation5]
    $region5: #{tpu_custom_call.1} parent=1 // pred_fallthru
      _
    // Predicated region
    $region6: #{tpu_custom_call.1} parent=1 // pred_check
      _
    $region7: #{tpu_custom_call.1} parent=1 // pred_check_branch
      %26 = sbr.rel (0) target = $region9
    $region8: #{tpu_custom_call.1} parent=1 // pred_region
      %28 = vsyncadd [#allocation8], 0
      %s30 = sshll.u32 %s1, 4
      %s31 = int_to_ptr.hbm [resolvable:$true] %s30
      %33 = dma.hbm_to_smem %s31, 16, [#allocation7], [#allocation8]
    $region9: #{tpu_custom_call.1} parent=1 // pred_fallthru
      _
    // Predicated region
    $region10: #{tpu_custom_call.1} parent=1 // pred_check
      _
    $region11: #{tpu_custom_call.1} parent=1 // pred_check_branch
      %35 = sbr.rel (0) target = $region13
    $region12: #{tpu_custom_call.1} parent=1 // pred_region
      %37 = vsyncadd [#allocation6], 0
      %s39 = sshll.u32 %s2, 4
      %s40 = int_to_ptr.vmem [resolvable:$true] %s39
      %42 = dma.vmem_to_smem %s40, 16, [#allocation9], [#allocation6]
    $region13: #{tpu_custom_call.1} parent=1 // pred_fallthru
      _
    // Predicated region
    $region14: #{tpu_custom_call.1} parent=1 // pred_check
      _
    $region15: #{tpu_custom_call.1} parent=1 // pred_check_branch
      %44 = sbr.rel (0) target = $region17
    $region16: #{tpu_custom_call.1} parent=1 // pred_region
      %46 = vsyncadd [#allocation11], 0
      %s48 = sshll.u32 %s3, 4
      %s49 = int_to_ptr.vmem [resolvable:$true] %s48
      %51 = dma.vmem_to_smem %s49, 16, [#allocation10], [#allocation11]
    $region17: #{tpu_custom_call.1} parent=1 // pred_fallthru
      _
    // Predicated region
    $region18: #{tpu_custom_call.1} parent=1 // pred_check
      _
    $region19: #{tpu_custom_call.1} parent=1 // pred_check_branch
      %53 = sbr.rel (0) target = $region21
    $region20: #{tpu_custom_call.1} parent=1 // pred_region
      %55 = vsyncadd [#allocation3], 0
      %s56 = sshll.u32 %s4, 4
      %s57 = int_to_ptr.hbm [resolvable:$true] %s56
      %s58 = sshll.u32 [#allocation12], 4
      %s59 = int_to_ptr.vmem [resolvable:$true] %s58
      %64 = dma.hbm_to_vmem [thread:$0]  %s57, 384, %s59, [#allocation3], 128, 128, 8
    $region21: #{tpu_custom_call.1} parent=1 // pred_fallthru
      _
    // Predicated region
    $region22: #{tpu_custom_call.1} parent=1 // pred_check
      _
    $region23: #{tpu_custom_call.1} parent=1 // pred_check_branch
      %66 = sbr.rel (0) target = $region25
    $region24: #{tpu_custom_call.1} parent=1 // pred_region
      %68 = dma.done [#allocation5], 16
    $region25: #{tpu_custom_call.1} parent=1 // pred_fallthru
      _
    // Predicated region
    $region26: #{tpu_custom_call.1} parent=1 // pred_check
      _
    $region27: #{tpu_custom_call.1} parent=1 // pred_check_branch
      %70 = sbr.rel (0) target = $region29
    $region28: #{tpu_custom_call.1} parent=1 // pred_region
      %72 = dma.done [#allocation8], 16
    $region29: #{tpu_custom_call.1} parent=1 // pred_fallthru
      _
    // Predicated region
    $region30: #{tpu_custom_call.1} parent=1 // pred_check
      _
    $region31: #{tpu_custom_call.1} parent=1 // pred_check_branch
      %74 = sbr.rel (0) target = $region33
    $region32: #{tpu_custom_call.1} parent=1 // pred_region
      %76 = dma.done [#allocation6], 16
    $region33: #{tpu_custom_call.1} parent=1 // pred_fallthru
      _
    // Predicated region
    $region34: #{tpu_custom_call.1} parent=1 // pred_check
      _
    $region35: #{tpu_custom_call.1} parent=1 // pred_check_branch
      %78 = sbr.rel (0) target = $region37
    $region36: #{tpu_custom_call.1} parent=1 // pred_region
      %80 = dma.done [#allocation11], 16
    $region37: #{tpu_custom_call.1} parent=1 // pred_fallthru
      _
    // Predicated region
    $region38: #{tpu_custom_call.1} parent=1 // pred_check
      _
    $region39: #{tpu_custom_call.1} parent=1 // pred_check_branch
      %82 = sbr.rel (0) target = $region41
    $region40: #{tpu_custom_call.1} parent=1 // pred_region
      %84 = dma.done [#allocation3], 384
    $region41: #{tpu_custom_call.1} parent=1 // pred_fallthru
      _
    %85 = sfence
    %v86 = vld [vmem:[#allocation12] sm:$0xff]
    %s87 = scalar_lea.vmem [#allocation12], 8
    %v88 = vld [vmem:[%s87] sm:$0xff]
    %s89 = scalar_lea.vmem [#allocation12], 16
    %v90 = vld [vmem:[%s89] sm:$0xff]
    %s91 = sld [smem:[#allocation2]]
    %v92 = vstv %s91
    %v93 = vmul.f32 %v86, %v92
    %s94 = sld [smem:[#allocation7]]
    %v95 = vstv %s94
    %v96 = vmul.f32 %v88, %v95
    %v97 = vadd.f32 %v93, %v96
    %s98 = sld [smem:[#allocation9]]
    %v99 = vstv %s98
    %v100 = vmul.f32 %v90, %v99
    %v101 = vadd.f32 %v97, %v100
    %s102 = sld [smem:[#allocation10]]
    %v103 = vstv %s102
    %v104 = vadd.f32 %v101, %v103
    %s105 = sld [smem:[#allocation2 + $0x1]]
    %v106 = vstv %s105
    %v107 = vmul.f32 %v86, %v106
    %s108 = sld [smem:[#allocation7 + $0x1]]
    %v109 = vstv %s108
    %v110 = vmul.f32 %v88, %v109
    %v111 = vadd.f32 %v107, %v110
    %s112 = sld [smem:[#allocation9 + $0x1]]
    %v113 = vstv %s112
    %v114 = vmul.f32 %v90, %v113
    %v115 = vadd.f32 %v111, %v114
    %s116 = sld [smem:[#allocation10 + $0x1]]
    %v117 = vstv %s116
    %v118 = vadd.f32 %v115, %v117
    %v119 = vmin.f32 %v104, %v118
    %s120 = sld [smem:[#allocation2 + $0x2]]
    %v121 = vstv %s120
    %v122 = vmul.f32 %v86, %v121
    %s123 = sld [smem:[#allocation7 + $0x2]]
    %v124 = vstv %s123
    %v125 = vmul.f32 %v88, %v124
    %v126 = vadd.f32 %v122, %v125
    %s127 = sld [smem:[#allocation9 + $0x2]]
    %v128 = vstv %s127
    %v129 = vmul.f32 %v90, %v128
    %v130 = vadd.f32 %v126, %v129
    %s131 = sld [smem:[#allocation10 + $0x2]]
    %v132 = vstv %s131
    %v133 = vadd.f32 %v130, %v132
    %v134 = vmin.f32 %v119, %v133
    %135 = vst [vmem:[#allocation13] sm:$0xff] %v134
    // Predicated region
    $region42: #{tpu_custom_call.1} parent=1 // pred_check
      _
    $region43: #{tpu_custom_call.1} parent=1 // pred_check_branch
      %137 = sbr.rel (0) target = $region45
    $region44: #{tpu_custom_call.1} parent=1 // pred_region
      %139 = vsyncadd [#allocation4], 0
      %s141 = sshll.u32 [#allocation13], 4
      %s142 = int_to_ptr.vmem [resolvable:$true] %s141
      %s143 = sshll.u32 %s5, 4
      %s144 = int_to_ptr.hbm [resolvable:$true] %s143
      %146 = dma.vmem_to_hbm [thread:$0]  %s142, 128, %s144, [#allocation4]
    $region45: #{tpu_custom_call.1} parent=1 // pred_fallthru
      _
    // Predicated region
    $region46: #{tpu_custom_call.1} parent=1 // pred_check
      _
    $region47: #{tpu_custom_call.1} parent=1 // pred_check_branch
      %148 = sbr.rel (0) target = $region49
    $region48: #{tpu_custom_call.1} parent=1 // pred_region
      %150 = dma.done [#allocation4], 128
    $region49: #{tpu_custom_call.1} parent=1 // pred_fallthru
      _
    %151 = vsyncpa [#allocation3], 1
    %152 = vsyncpa [#allocation4], 1
    %153 = vsyncpa [#allocation5], 1
    %154 = vsyncpa [#allocation8], 1
    %155 = vsyncpa [#allocation6], 1
    %156 = vsyncpa [#allocation11], 1

</llo_original>
